<compile_context>
chip_gen: v5e
topology: v5e:2x2
jax: 0.10.0
libtpu: 0.0.40
codegen_flags: <defaults>
</compile_context>

<pallas_src>
import jax
import jax.numpy as jnp
from jax.experimental import pallas as pl
from jax.experimental.pallas import tpu as pltpu

LN_EPS = 1e-5                       # torch.nn.LayerNorm default eps
IN_F, HID_F, OUT_F = 12, 8, 10      # Linear(12->8), LayerNorm(8), Linear(8->10)
STACK_F = HID_F + HID_F + OUT_F     # 26 rows of the fused (stacked) output


def mlp_ln_mlp_kernel(xT_ref, w1_ref, b1_ref, g_ref, beta_ref, w2_ref, b2_ref,
                      out_ref):
    """One (features, TB) batch tile; batch on the lane axis.

    out_ref is the fused (26, TB) output: rows 0:8 = out1, 8:16 = out2,
    16:26 = out3.
    """
    xT = xT_ref[...]                                              # (12, TB)

    # mlp_1: Linear(12 -> 8), transposed: (8,12) @ (12,TB) -> (8,TB)
    h = jnp.dot(w1_ref[...], xT,
                preferred_element_type=jnp.float32) + b1_ref[...]

    # LayerNorm over the feature axis (axis 0 in this layout), affine,
    # biased variance + eps inside the sqrt — matches torch.nn.LayerNorm.
    mean = jnp.mean(h, axis=0, keepdims=True)                     # (1, TB)
    centered = h - mean
    var = jnp.mean(centered * centered, axis=0, keepdims=True)
    inv_std = jax.lax.rsqrt(var + LN_EPS)
    o2 = centered * inv_std * g_ref[...] + beta_ref[...]          # (8, TB)

    # mlp_3: Linear(8 -> 10), transposed: (10,8) @ (8,TB) -> (10,TB)
    o3 = jnp.dot(w2_ref[...], o2,
                 preferred_element_type=jnp.float32) + b2_ref[...]

    # Single fused output: static row-slices on the ref (no copies).
    out_ref[0:HID_F, :] = h
    out_ref[HID_F:2 * HID_F, :] = o2
    out_ref[2 * HID_F:STACK_F, :] = o3


def _round_up(n, m):
    return ((n + m - 1) // m) * m


def _cdiv(a, b):
    return -(-a // b)


def test_model_forward(x, w1, b1, gamma, beta, w2, b2, *,
                       tb_max=16384, return_transposed=False):
    """x: (B, 12) f32.  Weights in PyTorch layout: w1 (8,12), b1 (8,),
    gamma/beta (8,), w2 (10,8), b2 (10,).

    Returns (out1, out2, out3) with shapes (B,8), (B,8), (B,10), matching
    TestModel.forward.  With return_transposed=True the (features, B) layout
    is returned instead ((8,B),(8,B),(10,B)) so a layout-aware consumer can
    skip the wrapper-side un-transposes (saves ~2x HBM traffic end-to-end).

    On v7x pass tb_max=32768 (3.2 TB/s HBM; footprint ~13 MiB, still well
    under the 32 MiB scoped VMEM limit).
    """
    B = x.shape[0]
    # Pad the batch only to a lane multiple (128); do NOT round up to a tile
    # multiple — the ragged last tile is handled by Pallas (clamped DMA /
    # masked writeback), avoiding up to tb-1 columns of wasted HBM traffic.
    b_pad = _round_up(max(B, 1), 128)
    # Tile: as large as tb_max, but split so there are >=2 roughly equal tiles
    # when B > 128 (keeps both v7x TensorCores busy for mid-sized batches).
    tb = min(tb_max, _round_up(_cdiv(b_pad, 2), 128))
    grid = (_cdiv(b_pad, tb),)

    # Wrapper-side layout plumbing (interface-mandated): pad batch and put it
    # on the lane axis.  With return_transposed=True the output side needs no
    # transposes at all.
    # TODO(synk): if the producer can also hand over x already as (12, B),
    # the input transpose disappears too and end-to-end traffic hits the
    # kernel's minimum.
    xT = jnp.pad(x, ((0, b_pad - B), (0, 0))).T                   # (12, b_pad)
    b1c = b1.reshape(HID_F, 1)
    gc = gamma.reshape(HID_F, 1)
    bc = beta.reshape(HID_F, 1)
    b2c = b2.reshape(OUT_F, 1)

    batch_spec = lambda rows: pl.BlockSpec((rows, tb), lambda i: (0, i))
    resident = lambda shape: pl.BlockSpec(shape, lambda i: (0, 0))

    stackedT = pl.pallas_call(
        mlp_ln_mlp_kernel,
        grid=grid,
        out_shape=jax.ShapeDtypeStruct((STACK_F, b_pad), jnp.float32),
        in_specs=[
            batch_spec(IN_F),          # xT   (12, b_pad) tiled along batch
            resident((HID_F, IN_F)),   # w1   (8, 12)   VMEM-resident
            resident((HID_F, 1)),      # b1
            resident((HID_F, 1)),      # gamma
            resident((HID_F, 1)),      # beta
            resident((OUT_F, HID_F)),  # w2   (10, 8)
            resident((OUT_F, 1)),      # b2
        ],
        out_specs=batch_spec(STACK_F),  # fused (26, b_pad): single DMA stream
        compiler_params=pltpu.CompilerParams(
            # Batch tiles are independent: shards across v7x's 2 TensorCores,
            # harmless no-op on single-TC v5e/v6e.
            dimension_semantics=("parallel",),
            # ~6 MiB double-buffered at tb=16K, ~13 MiB at tb=32K; 32 MiB is
            # safe on v5e/v6e/v7x and leaves headroom.
            vmem_limit_bytes=32 * 1024 * 1024,
        ),
    )(xT, w1, b1c, gc, bc, w2, b2c)

    out1T = stackedT[0:HID_F, :B]
    out2T = stackedT[HID_F:2 * HID_F, :B]
    out3T = stackedT[2 * HID_F:STACK_F, :B]
    if return_transposed:
        return out1T, out2T, out3T
    # Interface-mandated un-transpose back to PyTorch's (B, features) layout.
    return out1T.T, out2T.T, out3T.T


def init_params(key):
    """Deterministic params in PyTorch nn.Linear / nn.LayerNorm layout."""
    k1, k2, k3, k4 = jax.random.split(key, 4)
    bound1 = 1.0 / jnp.sqrt(float(IN_F))
    w1 = jax.random.uniform(k1, (HID_F, IN_F), jnp.float32, -bound1, bound1)
    b1 = jax.random.uniform(k2, (HID_F,), jnp.float32, -bound1, bound1)
    gamma = jnp.ones((HID_F,), jnp.float32)
    beta = jnp.zeros((HID_F,), jnp.float32)
    bound2 = 1.0 / jnp.sqrt(float(HID_F))
    w2 = jax.random.uniform(k3, (OUT_F, HID_F), jnp.float32, -bound2, bound2)
    b2 = jax.random.uniform(k4, (OUT_F,), jnp.float32, -bound2, bound2)
    return w1, b1, gamma, beta, w2, b2


def reference_forward(x, w1, b1, gamma, beta, w2, b2):
    out1 = x @ w1.T + b1
    mean = out1.mean(axis=-1, keepdims=True)
    var = ((out1 - mean) ** 2).mean(axis=-1, keepdims=True)
    out2 = (out1 - mean) / jnp.sqrt(var + LN_EPS) * gamma + beta
    out3 = out2 @ w2.T + b2
    return out1, out2, out3


def _check(x, params):
    B = x.shape[0]
    out1, out2, out3 = jax.block_until_ready(test_model_forward(x, *params))
    r1, r2, r3 = reference_forward(x, *params)
    assert out1.shape == (B, HID_F)
    assert out2.shape == (B, HID_F)
    assert out3.shape == (B, OUT_F)
    assert jnp.allclose(out1, r1, atol=1e-5, rtol=1e-5)
    assert jnp.allclose(out2, r2, atol=1e-5, rtol=1e-5)
    assert jnp.allclose(out3, r3, atol=1e-5, rtol=1e-5)
    # Transposed end-to-end path (no wrapper un-transposes).
    t1, t2, t3 = jax.block_until_ready(
        test_model_forward(x, *params, return_transposed=True))
    assert jnp.allclose(t1.T, r1, atol=1e-5, rtol=1e-5)
    assert jnp.allclose(t2.T, r2, atol=1e-5, rtol=1e-5)
    assert jnp.allclose(t3.T, r3, atol=1e-5, rtol=1e-5)


if __name__ == "__main__":
    key = jax.random.PRNGKey(0)
    kx1, kx2, kp = jax.random.split(key, 3)
    params = init_params(kp)

    # Small smoke test (single tile).
    _check(jax.random.normal(kx1, (8, IN_F), jnp.float32), params)
    # Multi-tile + ragged-last-tile + padded-batch path (B=300 -> b_pad=384,
    # tb=256, grid=2 with a ragged second tile).
    _check(jax.random.normal(kx2, (300, IN_F), jnp.float32), params)

    print("KERNEL_OK")
</pallas_src>

<mosaic_0001>
module attributes {stable_mosaic.version = 11 : i64} {
  func.func @mlp_ln_mlp_kernel(%arg0: i32, %arg1: memref<12x128xf32, #tpu.memory_space<vmem>>, %arg2: memref<8x12xf32, #tpu.memory_space<vmem>>, %arg3: memref<8x1xf32, #tpu.memory_space<vmem>>, %arg4: memref<8x1xf32, #tpu.memory_space<vmem>>, %arg5: memref<8x1xf32, #tpu.memory_space<vmem>>, %arg6: memref<10x8xf32, #tpu.memory_space<vmem>>, %arg7: memref<10x1xf32, #tpu.memory_space<vmem>>, %arg8: memref<26x128xf32, #tpu.memory_space<vmem>>) attributes {dimension_semantics = [#tpu.dimension_semantics<parallel>], iteration_bounds = array<i64: 1>, scalar_prefetch = 0 : i64, scratch_operands = 0 : i64, tpu.core_type = #tpu.core_type<tc>, window_params = [{transform_indices = @transform_0, window_bounds = array<i64: 12, 128>}, {pipeline_mode = #tpu.pipeline_mode<synchronous>, transform_indices = @transform_1, window_bounds = array<i64: 8, 12>}, {pipeline_mode = #tpu.pipeline_mode<synchronous>, transform_indices = @transform_2, window_bounds = array<i64: 8, 1>}, {pipeline_mode = #tpu.pipeline_mode<synchronous>, transform_indices = @transform_3, window_bounds = array<i64: 8, 1>}, {pipeline_mode = #tpu.pipeline_mode<synchronous>, transform_indices = @transform_4, window_bounds = array<i64: 8, 1>}, {pipeline_mode = #tpu.pipeline_mode<synchronous>, transform_indices = @transform_5, window_bounds = array<i64: 10, 8>}, {pipeline_mode = #tpu.pipeline_mode<synchronous>, transform_indices = @transform_6, window_bounds = array<i64: 10, 1>}, {transform_indices = @transform_7, window_bounds = array<i64: 26, 128>}]} {
    %c0 = arith.constant 0 : index
    %c0_0 = arith.constant 0 : index
    %0 = vector.load %arg1[%c0, %c0_0] : memref<12x128xf32, #tpu.memory_space<vmem>>, vector<12x128xf32>
    %c0_1 = arith.constant 0 : index
    %c0_2 = arith.constant 0 : index
    %1 = vector.load %arg2[%c0_1, %c0_2] : memref<8x12xf32, #tpu.memory_space<vmem>>, vector<8x12xf32>
    %cst = arith.constant dense<0.000000e+00> : vector<8x128xf32>
    %2 = tpu.matmul %1, %0, %cst {dimension_numbers = #tpu.dot_dimension_numbers<[1], [0], [0], [1], [0, 0, 1, 1], [], []>} : vector<8x12xf32>, vector<12x128xf32>, vector<8x128xf32> -> vector<8x128xf32>
    %c0_3 = arith.constant 0 : index
    %c0_4 = arith.constant 0 : index
    %3 = vector.load %arg3[%c0_3, %c0_4] : memref<8x1xf32, #tpu.memory_space<vmem>>, vector<8x1xf32>
    %4 = vector.broadcast %3 : vector<8x1xf32> to vector<8x128xf32>
    %5 = arith.addf %2, %4 : vector<8x128xf32>
    %cst_5 = arith.constant dense<0.000000e+00> : vector<128xf32>
    %6 = vector.multi_reduction <add>, %5, %cst_5 [0] : vector<8x128xf32> to vector<128xf32>
    %7 = vector.shape_cast %6 : vector<128xf32> to vector<1x128xf32>
    %cst_6 = arith.constant 8.000000e+00 : f32
    %8 = vector.broadcast %cst_6 : f32 to vector<1x128xf32>
    %9 = arith.divf %7, %8 : vector<1x128xf32>
    %10 = vector.broadcast %9 : vector<1x128xf32> to vector<8x128xf32>
    %11 = arith.subf %5, %10 : vector<8x128xf32>
    %12 = arith.mulf %11, %11 : vector<8x128xf32>
    %cst_7 = arith.constant dense<0.000000e+00> : vector<128xf32>
    %13 = vector.multi_reduction <add>, %12, %cst_7 [0] : vector<8x128xf32> to vector<128xf32>
    %14 = vector.shape_cast %13 : vector<128xf32> to vector<1x128xf32>
    %cst_8 = arith.constant 8.000000e+00 : f32
    %15 = vector.broadcast %cst_8 : f32 to vector<1x128xf32>
    %16 = arith.divf %14, %15 : vector<1x128xf32>
    %cst_9 = arith.constant 9.99999974E-6 : f32
    %17 = vector.broadcast %cst_9 : f32 to vector<1x128xf32>
    %18 = arith.addf %16, %17 : vector<1x128xf32>
    %19 = math.rsqrt %18 : vector<1x128xf32>
    %20 = vector.broadcast %19 : vector<1x128xf32> to vector<8x128xf32>
    %21 = arith.mulf %11, %20 : vector<8x128xf32>
    %c0_10 = arith.constant 0 : index
    %c0_11 = arith.constant 0 : index
    %22 = vector.load %arg4[%c0_10, %c0_11] : memref<8x1xf32, #tpu.memory_space<vmem>>, vector<8x1xf32>
    %23 = vector.broadcast %22 : vector<8x1xf32> to vector<8x128xf32>
    %24 = arith.mulf %21, %23 : vector<8x128xf32>
    %c0_12 = arith.constant 0 : index
    %c0_13 = arith.constant 0 : index
    %25 = vector.load %arg5[%c0_12, %c0_13] : memref<8x1xf32, #tpu.memory_space<vmem>>, vector<8x1xf32>
    %26 = vector.broadcast %25 : vector<8x1xf32> to vector<8x128xf32>
    %27 = arith.addf %24, %26 : vector<8x128xf32>
    %c0_14 = arith.constant 0 : index
    %c0_15 = arith.constant 0 : index
    %28 = vector.load %arg6[%c0_14, %c0_15] : memref<10x8xf32, #tpu.memory_space<vmem>>, vector<10x8xf32>
    %cst_16 = arith.constant dense<0.000000e+00> : vector<10x128xf32>
    %29 = tpu.matmul %28, %27, %cst_16 {dimension_numbers = #tpu.dot_dimension_numbers<[1], [0], [0], [1], [0, 0, 1, 1], [], []>} : vector<10x8xf32>, vector<8x128xf32>, vector<10x128xf32> -> vector<10x128xf32>
    %c0_17 = arith.constant 0 : index
    %c0_18 = arith.constant 0 : index
    %30 = vector.load %arg7[%c0_17, %c0_18] : memref<10x1xf32, #tpu.memory_space<vmem>>, vector<10x1xf32>
    %31 = vector.broadcast %30 : vector<10x1xf32> to vector<10x128xf32>
    %32 = arith.addf %29, %31 : vector<10x128xf32>
    %c0_19 = arith.constant 0 : index
    %c0_20 = arith.constant 0 : index
    %33 = vector.load %arg8[%c0_19, %c0_20] : memref<26x128xf32, #tpu.memory_space<vmem>>, vector<8x128xf32>
    tpu.vector_store %arg8[%c0_19, %c0_20], %5 {strides = array<i32>} : memref<26x128xf32, #tpu.memory_space<vmem>>, vector<8x128xf32>,
    %c8 = arith.constant 8 : index
    %c0_21 = arith.constant 0 : index
    %34 = vector.load %arg8[%c8, %c0_21] : memref<26x128xf32, #tpu.memory_space<vmem>>, vector<8x128xf32>
    tpu.vector_store %arg8[%c8, %c0_21], %27 {strides = array<i32>} : memref<26x128xf32, #tpu.memory_space<vmem>>, vector<8x128xf32>,
    %c16 = arith.constant 16 : index
    %c0_22 = arith.constant 0 : index
    %35 = vector.load %arg8[%c16, %c0_22] : memref<26x128xf32, #tpu.memory_space<vmem>>, vector<10x128xf32>
    tpu.vector_store %arg8[%c16, %c0_22], %32 {strides = array<i32>} : memref<26x128xf32, #tpu.memory_space<vmem>>, vector<10x128xf32>,
    return
  }
  func.func @transform_0(%arg0: i32) -> (i32, i32) {
    %c0_i32 = arith.constant 0 : i32
    %c0_i32_0 = arith.constant 0 : i32
    return %c0_i32, %arg0 : i32, i32
  }
  func.func @transform_1(%arg0: i32) -> (i32, i32) {
    %c0_i32 = arith.constant 0 : i32
    %c0_i32_0 = arith.constant 0 : i32
    %c0_i32_1 = arith.constant 0 : i32
    return %c0_i32, %c0_i32_0 : i32, i32
  }
  func.func @transform_2(%arg0: i32) -> (i32, i32) {
    %c0_i32 = arith.constant 0 : i32
    %c0_i32_0 = arith.constant 0 : i32
    %c0_i32_1 = arith.constant 0 : i32
    return %c0_i32, %c0_i32_0 : i32, i32
  }
  func.func @transform_3(%arg0: i32) -> (i32, i32) {
    %c0_i32 = arith.constant 0 : i32
    %c0_i32_0 = arith.constant 0 : i32
    %c0_i32_1 = arith.constant 0 : i32
    return %c0_i32, %c0_i32_0 : i32, i32
  }
  func.func @transform_4(%arg0: i32) -> (i32, i32) {
    %c0_i32 = arith.constant 0 : i32
    %c0_i32_0 = arith.constant 0 : i32
    %c0_i32_1 = arith.constant 0 : i32
    return %c0_i32, %c0_i32_0 : i32, i32
  }
  func.func @transform_5(%arg0: i32) -> (i32, i32) {
    %c0_i32 = arith.constant 0 : i32
    %c0_i32_0 = arith.constant 0 : i32
    %c0_i32_1 = arith.constant 0 : i32
    return %c0_i32, %c0_i32_0 : i32, i32
  }
  func.func @transform_6(%arg0: i32) -> (i32, i32) {
    %c0_i32 = arith.constant 0 : i32
    %c0_i32_0 = arith.constant 0 : i32
    %c0_i32_1 = arith.constant 0 : i32
    return %c0_i32, %c0_i32_0 : i32, i32
  }
  func.func @transform_7(%arg0: i32) -> (i32, i32) {
    %c0_i32 = arith.constant 0 : i32
    %c0_i32_0 = arith.constant 0 : i32
    return %c0_i32, %arg0 : i32, i32
  }
}

</mosaic_0001>

<llo_original>
// kernel: tpu_custom_call.1
$region0: #{tpu_custom_call.1}
  #allocation0 [shape = 'u32[]', space=smem, size = 0x4, offset = 0x4, fixed_abs, tag = 'smem constant byte address 0x4 - core index']
  #allocation1 [shape = 'u32[72,128]{1,0:T(1,128)}', space=vmem, size = 0x9000, scoped, tag = 'internal scratch']
  %s0 = inlined_call_operand.vmem [shape: f32[12,128], index: 0, kind: input, shape index: {}]
  %s1 = inlined_call_operand.vmem [shape: f32[8,12], index: 1, kind: input, shape index: {}]
  %s2 = inlined_call_operand.vmem [shape: f32[8,1], index: 2, kind: input, shape index: {}]
  %s3 = inlined_call_operand.vmem [shape: f32[8,1], index: 3, kind: input, shape index: {}]
  %s4 = inlined_call_operand.vmem [shape: f32[8,1], index: 4, kind: input, shape index: {}]
  %s5 = inlined_call_operand.vmem [shape: f32[10,8], index: 5, kind: input, shape index: {}]
  %s6 = inlined_call_operand.vmem [shape: f32[10,1], index: 6, kind: input, shape index: {}]
  %s7 = inlined_call_operand.hbm [shape: f32[26,128], index: 7, kind: output, shape index: {}]
  %s8 = sld [smem:[#allocation0]]
  $region38: #{tpu_custom_call.1} parent=0
    _
  %s10 = ssub.s32 1, %s8
  %s11 = scalar_select 0, %s10, %s8
  $region1: #{tpu_custom_call.1} parent=0
    #allocation2 [shape = 'u8[16384]{0}', space=vmem, size = 0x4000, scoped, tag = 'output window, operand 0, single buffered']
    #allocation3 [shape = 's32[1]{0}', space=sflag, size = 0x4, scoped, tag = 'scoped memory for tpu_custom_call.1']
    %12 = vsyncpa [#allocation3], 0
    // Predicated region
    $region2: #{tpu_custom_call.1} parent=1 // pred_check
      _
    $region3: #{tpu_custom_call.1} parent=1 // pred_check_branch
      %14 = sbr.rel (0) target = $region5
    $region4: #{tpu_custom_call.1} parent=1 // pred_region
      _
    $region5: #{tpu_custom_call.1} parent=1 // pred_fallthru
      _
    // Predicated region
    $region6: #{tpu_custom_call.1} parent=1 // pred_check
      _
    $region7: #{tpu_custom_call.1} parent=1 // pred_check_branch
      %16 = sbr.rel (0) target = $region9
    $region8: #{tpu_custom_call.1} parent=1 // pred_region
      _
    $region9: #{tpu_custom_call.1} parent=1 // pred_fallthru
      _
    // Predicated region
    $region10: #{tpu_custom_call.1} parent=1 // pred_check
      _
    $region11: #{tpu_custom_call.1} parent=1 // pred_check_branch
      %18 = sbr.rel (0) target = $region13
    $region12: #{tpu_custom_call.1} parent=1 // pred_region
      _
    $region13: #{tpu_custom_call.1} parent=1 // pred_fallthru
      _
    // Predicated region
    $region14: #{tpu_custom_call.1} parent=1 // pred_check
      _
    $region15: #{tpu_custom_call.1} parent=1 // pred_check_branch
      %20 = sbr.rel (0) target = $region17
    $region16: #{tpu_custom_call.1} parent=1 // pred_region
      _
    $region17: #{tpu_custom_call.1} parent=1 // pred_fallthru
      _
    // Predicated region
    $region18: #{tpu_custom_call.1} parent=1 // pred_check
      _
    $region19: #{tpu_custom_call.1} parent=1 // pred_check_branch
      %22 = sbr.rel (0) target = $region21
    $region20: #{tpu_custom_call.1} parent=1 // pred_region
      _
    $region21: #{tpu_custom_call.1} parent=1 // pred_fallthru
      _
    // Predicated region
    $region22: #{tpu_custom_call.1} parent=1 // pred_check
      _
    $region23: #{tpu_custom_call.1} parent=1 // pred_check_branch
      %24 = sbr.rel (0) target = $region25
    $region24: #{tpu_custom_call.1} parent=1 // pred_region
      _
    $region25: #{tpu_custom_call.1} parent=1 // pred_fallthru
      _
    // Predicated region
    $region26: #{tpu_custom_call.1} parent=1 // pred_check
      _
    $region27: #{tpu_custom_call.1} parent=1 // pred_check_branch
      %26 = sbr.rel (0) target = $region29
    $region28: #{tpu_custom_call.1} parent=1 // pred_region
      _
    $region29: #{tpu_custom_call.1} parent=1 // pred_fallthru
      _
    %v27 = vld [vmem:[%s0] sm:$0xff]
    %v28 = vld [vmem:[%s0 + $0x8] sm:$0xf]
    %v29 = vld [vmem:[%s1] sm:$0xff]
    %v30 = vld [vmem:[%s2] sm:$0xff]
    %32 = vset.pattern.permute.xlu0 0
    %33 = vperm.xlu0 %32, %v30
    %v34 = vpop.permute.xlu0 %33
    %vm36 = vcmask 97280
    %v38 = vsel %vm36, %v29, 0
    %vm40 = vcmask 1043456
    %v42 = vsel %vm40, %v28, 0
    %44 = vmatpush.msra.mxu0 0.0
    %45 = vmatpush.msra.mxu0 0.0
    %46 = vmatpush.msra.mxu0 0.0
    %47 = vmatpush.msra.mxu0 0.0
    %48 = vmatpush.msra.mxu0 0.0
    %49 = vmatpush.msra.mxu0 0.0
    %50 = vmatpush.msra.mxu0 0.0
    %51 = vmatpush.msra.mxu0 0.0
    %52 = vmatpush.msra.mxu0 0.0
    %53 = vmatpush.msra.mxu0 0.0
    %54 = vmatpush.msra.mxu0 0.0
    %55 = vmatpush.msra.mxu0 0.0
    %56 = vmatpush.msra.mxu0 0.0
    %57 = vmatpush.msra.mxu0 0.0
    %58 = vmatpush.msra.mxu0 %v42
    %59 = vmatpush.msra.mxu0 %v27
    %60 = vmatmul.f32.gmra.mxu0 %v38
    %v61 = vpop.f32.mrf.mxu0
    %v62 = vadd.f32 %v34, %v61
    %63 = vdwg.mxu0
    %v64 = vrot.slane %v62, 4
    %v65 = vadd.f32 %v62, %v64
    %v66 = vrot.slane %v65, 2
    %v67 = vadd.f32 %v65, %v66
    %v68 = vrot.slane %v67, 1
    %v69 = vadd.f32 %v67, %v68
    %v70 = vrcp.pop 8.0
    %v71 = vmul.f32 8.0, %v70
    %v72 = vsub.f32 1.0, %v71
    %v73 = vmul.f32 %v70, %v72
    %v74 = vadd.f32 %v70, %v73
    %vm75 = vweird.f32 %v70
    %v76 = vsel %vm75, %v70, %v74
    %v77 = vmul.f32 %v69, %v76
    %v78 = vsub.f32 %v62, %v77
    %v79 = vmul.f32 %v78, %v78
    %v80 = vrot.slane %v79, 4
    %v81 = vadd.f32 %v79, %v80
    %v82 = vrot.slane %v81, 2
    %v83 = vadd.f32 %v81, %v82
    %v84 = vrot.slane %v83, 1
    %v85 = vadd.f32 %v83, %v84
    %v86 = vmul.f32 %v85, %v76
    %v87 = vadd.f32 %v86, 1e-05
    %v88 = vrsqrt.pop %v87
    %v89 = vmul.f32 %v88, %v87
    %v90 = vmul.f32 %v89, %v88
    %v91 = vmul.f32 0.5, %v90
    %v92 = vsub.f32 1.5, %v91
    %v93 = vmul.f32 %v88, %v92
    %vm94 = vweird.f32 %v87
    %vm95 = vweird.f32 %v88
    %vm96 = vmor %vm94, %vm95
    %v97 = vsel %vm96, %v88, %v93
    %v98 = vmul.f32 %v78, %v97
    %v99 = vld [vmem:[%s3] sm:$0xff]
    %101 = vset.pattern.permute.xlu0 0
    %102 = vperm.xlu0 %101, %v99
    %v103 = vpop.permute.xlu0 %102
    %v105 = vmul.f32 %v98, %v103
    %v106 = vld [vmem:[%s4] sm:$0xff]
    %108 = vset.pattern.permute.xlu0 0
    %109 = vperm.xlu0 %108, %v106
    %v110 = vpop.permute.xlu0 %109
    %v112 = vadd.f32 %v105, %v110
    %v113 = vld [vmem:[%s5] sm:$0xff]
    %v114 = vld [vmem:[%s5 + $0x8] sm:$0x3]
    %v115 = vld [vmem:[%s6] sm:$0xff]
    %v116 = vld [vmem:[%s6 + $0x8] sm:$0x3]
    %118 = vset.pattern.permute.xlu0 0
    %119 = vperm.xlu0 %118, %v115
    %v120 = vpop.permute.xlu0 %119
    %123 = vset.pattern.permute.xlu0 0
    %124 = vperm.xlu0 %123, %v116
    %v125 = vpop.permute.xlu0 %124
    %vm127 = vcmask 64512
    %v129 = vsel %vm127, %v113, 0
    %v132 = vsel %vm127, %v114, 0
    %134 = vmatpush.msra.mxu0 0.0
    %135 = vmatpush.msra.mxu0 0.0
    %136 = vmatpush.msra.mxu0 0.0
    %137 = vmatpush.msra.mxu0 0.0
    %138 = vmatpush.msra.mxu0 0.0
    %139 = vmatpush.msra.mxu0 0.0
    %140 = vmatpush.msra.mxu0 0.0
    %141 = vmatpush.msra.mxu0 0.0
    %142 = vmatpush.msra.mxu0 0.0
    %143 = vmatpush.msra.mxu0 0.0
    %144 = vmatpush.msra.mxu0 0.0
    %145 = vmatpush.msra.mxu0 0.0
    %146 = vmatpush.msra.mxu0 0.0
    %147 = vmatpush.msra.mxu0 0.0
    %148 = vmatpush.msra.mxu0 0.0
    %149 = vmatpush.msra.mxu0 %v112
    %150 = vmatmul.f32.gmra.mxu0 %v129
    %v151 = vpop.f32.mrf.mxu0
    %v152 = vadd.f32 %v120, %v151
    %153 = vmatmul.f32.gmra.mxu0 %v132
    %v154 = vpop.f32.mrf.mxu0
    %v155 = vadd.f32 %v125, %v154
    %156 = vdwg.mxu0
    %157 = vst [vmem:[#allocation2] sm:$0xff] %v62
    %158 = vst [vmem:[#allocation2 + $0x8] sm:$0xff] %v112
    %159 = vst [vmem:[#allocation2 + $0x10] sm:$0xff] %v152
    %160 = vst [vmem:[#allocation2 + $0x18] sm:$0x3] %v155
    // Predicated region
    $region30: #{tpu_custom_call.1} parent=1 // pred_check
      _
    $region31: #{tpu_custom_call.1} parent=1 // pred_check_branch
      %162 = sbr.rel (0) target = $region33
    $region32: #{tpu_custom_call.1} parent=1 // pred_region
      %164 = vsyncadd [#allocation3], 0
      %s165 = sshll.u32 [#allocation2], 4
      %s166 = int_to_ptr.vmem [resolvable:$true] %s165
      %s167 = sshll.u32 %s7, 4
      %s168 = int_to_ptr.hbm [resolvable:$true] %s167
      %173 = dma.vmem_to_hbm [thread:$0]  %s166, 512, %s168, [#allocation3], 128, 128, 8
    $region33: #{tpu_custom_call.1} parent=1 // pred_fallthru
      _
    // Predicated region
    $region34: #{tpu_custom_call.1} parent=1 // pred_check
      _
    $region35: #{tpu_custom_call.1} parent=1 // pred_check_branch
      %175 = sbr.rel (0) target = $region37
    $region36: #{tpu_custom_call.1} parent=1 // pred_region
      %177 = dma.done [#allocation3], 512
    $region37: #{tpu_custom_call.1} parent=1 // pred_fallthru
      _
    %178 = vsyncpa [#allocation3], 1

</llo_original>
